<compile_context>
chip_gen: v7x
topology: tpu7x:2x2x1
jax: 0.10.0
libtpu: 0.0.40
codegen_flags: <defaults>
</compile_context>

<pallas_src>
import functools

import jax
import jax.numpy as jnp
from jax import lax
from jax.experimental import pallas as pl
from jax.experimental.pallas import tpu as pltpu


def _round_up(x, m):
    return ((x + m - 1) // m) * m


def fasttext_kernel(ids_ref, embw_ref, b_ref, out_ref):
    # ids_ref  : [TB, S]   int32  token ids for this batch tile
    # embw_ref : [VP, OP]  f32    (emb_table @ W) / S, zero-padded, VMEM-resident
    # b_ref    : [1, OP]   f32    FC bias, zero-padded
    # out_ref  : [TB, OP]  f32
    tb, s = ids_ref.shape
    vp = embw_ref.shape[0]

    ids = ids_ref[...]                                            # [TB, S]
    # Vocab on the 128-lane axis, S on sublanes -> dense vregs, cheap sublane
    # reduce, small live-range (no spills).
    vocab = lax.broadcasted_iota(jnp.int32, (tb, s, vp), 2)       # [TB, S, VP]
    onehot = (ids[:, :, None] == vocab).astype(jnp.float32)       # [TB, S, VP]
    counts = jnp.sum(onehot, axis=1)                              # [TB, VP] exact ints

    # Gather + mean-pool + FC as ONE MXU matmul (1/S already folded into embW).
    out = jnp.dot(counts, embw_ref[...],
                  preferred_element_type=jnp.float32)             # [TB, OP]
    out_ref[...] = out + b_ref[...]                               # broadcast bias


def prepare_fasttext_params(emb_table, W, b):
    """One-time param prep: pre-fuse emb @ W and zero-pad to lane-dense tiles.

    Returns (embW_pad [VP, OP], b_pad [1, OP]) with VP, OP multiples of 128.
    """
    V, D = emb_table.shape
    O = W.shape[1]
    VP = _round_up(V, 128)      # aligned MXU K dim / lane-dense counts
    OP = _round_up(O, 128)      # lane-dense output -> unmasked vst

    embW = jnp.dot(emb_table.astype(jnp.float32), W.astype(jnp.float32),
                   precision=lax.Precision.HIGHEST)               # [V, O]
    embW_pad = jnp.zeros((VP, OP), jnp.float32).at[:V, :O].set(embW)
    b_pad = jnp.zeros((1, OP), jnp.float32).at[0, :O].set(b.astype(jnp.float32))
    return embW_pad, b_pad


@functools.partial(jax.jit, static_argnames=("out_dim", "batch_tile"))
def fasttext_forward(text, embW_pad, b_pad, *, out_dim, batch_tile=None):
    """text: [seq_len, batch] int32 token ids. Returns [batch, out_dim] f32."""
    S, B = text.shape
    VP, OP = embW_pad.shape

    # Batch tiling: one big tile (whole batch) for small B; multiple "parallel"
    # tiles for large B so v7x's two TensorCores both get work.
    tb_cap = 256 if batch_tile is None else int(batch_tile)
    n_tiles = max(1, -(-B // tb_cap))          # cdiv
    TB = _round_up(-(-B // n_tiles), 8)
    B_pad = TB * n_tiles

    ids = text.T.astype(jnp.int32)                                # [B, S]
    if B_pad != B:
        ids = jnp.concatenate(
            [ids, jnp.zeros((B_pad - B, S), jnp.int32)], axis=0)

    # Fold the 1/S mean scale into the tiny resident fused weight so the
    # kernel's counts operand stays exact integers (no per-tile VPU multiply).
    embW_scaled = embW_pad * jnp.float32(1.0 / S)

    out = pl.pallas_call(
        fasttext_kernel,
        out_shape=jax.ShapeDtypeStruct((B_pad, OP), jnp.float32),
        grid=(n_tiles,),
        in_specs=[
            pl.BlockSpec((TB, S), lambda i: (i, 0)),      # per-tile token ids
            pl.BlockSpec((VP, OP), lambda i: (0, 0)),     # fused emb@W (resident)
            pl.BlockSpec((1, OP), lambda i: (0, 0)),      # bias (resident)
        ],
        out_specs=pl.BlockSpec((TB, OP), lambda i: (i, 0)),
        compiler_params=pltpu.CompilerParams(
            dimension_semantics=("parallel",)),           # batch tiles independent
    )(ids, embW_scaled, b_pad)

    return out[:B, :out_dim]


if __name__ == "__main__":
    # Model hyperparameters (small, consistent with FastText.__init__)
    VOCAB_SIZE = 50
    EMBEDDING_DIM = 128
    OUTPUT_DIM = 8
    PAD_IDX = 0

    # Input shape: [seq_len, batch]
    SEQ_LEN = 16
    BATCH = 32

    key = jax.random.PRNGKey(0)
    k_emb, k_w, k_b, k_text = jax.random.split(key, 4)

    # Deterministic parameter init (synthetic, not a checkpoint load).
    emb_table = jax.random.normal(k_emb, (VOCAB_SIZE, EMBEDDING_DIM), jnp.float32)
    # padding_idx row is zero, as in nn.Embedding(padding_idx=pad_idx)
    emb_table = emb_table.at[PAD_IDX].set(0.0)

    bound = 1.0 / (EMBEDDING_DIM ** 0.5)
    W = jax.random.uniform(k_w, (EMBEDDING_DIM, OUTPUT_DIM), jnp.float32,
                           minval=-bound, maxval=bound)
    b = jax.random.uniform(k_b, (OUTPUT_DIM,), jnp.float32,
                           minval=-bound, maxval=bound)

    text = jax.random.randint(k_text, (SEQ_LEN, BATCH), 0, VOCAB_SIZE, jnp.int32)

    # One-time parameter prep (padding + emb@W pre-fusion), then the jitted
    # per-call forward.
    embW_pad, b_pad = prepare_fasttext_params(emb_table, W, b)
    out = fasttext_forward(text, embW_pad, b_pad, out_dim=OUTPUT_DIM)
    out = jax.block_until_ready(out)

    # Pure-JAX reference (op-for-op equivalent of the PyTorch forward).
    emb_sbd = jnp.take(emb_table, text, axis=0)                        # [S, B, D]
    pooled_ref = jnp.mean(jnp.transpose(emb_sbd, (1, 0, 2)), axis=1)   # [B, D]
    out_ref = jnp.dot(pooled_ref, W, precision=lax.Precision.HIGHEST) + b

    assert out.shape == (BATCH, OUTPUT_DIM)
    max_err = float(jnp.max(jnp.abs(out - out_ref)))
    # All-f32 path: only float reassociation (emb@W pre-fusion) and MXU f32
    # multi-pass rounding remain, so a tight tolerance actually catches
    # regressions (e.g. an accidental bf16 table).
    assert jnp.allclose(out, out_ref, atol=1e-3, rtol=1e-3), max_err

    print("KERNEL_OK")
</pallas_src>

<mosaic_0001>
module attributes {stable_mosaic.version = 11 : i64} {
  func.func @fasttext_kernel(%arg0: i32, %arg1: memref<32x16xi32, #tpu.memory_space<vmem>>, %arg2: memref<128x128xf32, #tpu.memory_space<vmem>>, %arg3: memref<1x128xf32, #tpu.memory_space<vmem>>, %arg4: memref<32x128xf32, #tpu.memory_space<vmem>>) attributes {dimension_semantics = [#tpu.dimension_semantics<parallel>], iteration_bounds = array<i64: 1>, scalar_prefetch = 0 : i64, scratch_operands = 0 : i64, tpu.core_type = #tpu.core_type<tc>, window_params = [{transform_indices = @transform_0, window_bounds = array<i64: 32, 16>}, {pipeline_mode = #tpu.pipeline_mode<synchronous>, transform_indices = @transform_1, window_bounds = array<i64: 128, 128>}, {pipeline_mode = #tpu.pipeline_mode<synchronous>, transform_indices = @transform_2, window_bounds = array<i64: 1, 128>}, {transform_indices = @transform_3, window_bounds = array<i64: 32, 128>}]} {
    %c0 = arith.constant 0 : index
    %c0_0 = arith.constant 0 : index
    %0 = vector.load %arg1[%c0, %c0_0] : memref<32x16xi32, #tpu.memory_space<vmem>>, vector<32x16xi32>
    %1 = tpu.iota {dimensions = array<i32: 2>} : vector<32x16x128xi32>
    %2 = vector.shape_cast %0 : vector<32x16xi32> to vector<32x16x1xi32>
    %3 = vector.broadcast %2 : vector<32x16x1xi32> to vector<32x16x128xi32>
    %4 = arith.cmpi eq, %3, %1 : vector<32x16x128xi32>
    %5 = arith.extui %4 : vector<32x16x128xi1> to vector<32x16x128xi32>
    %6 = arith.sitofp %5 : vector<32x16x128xi32> to vector<32x16x128xf32>
    %cst = arith.constant dense<0.000000e+00> : vector<32x128xf32>
    %7 = vector.multi_reduction <add>, %6, %cst [1] : vector<32x16x128xf32> to vector<32x128xf32>
    %c0_1 = arith.constant 0 : index
    %c0_2 = arith.constant 0 : index
    %8 = vector.load %arg2[%c0_1, %c0_2] : memref<128x128xf32, #tpu.memory_space<vmem>>, vector<128x128xf32>
    %cst_3 = arith.constant dense<0.000000e+00> : vector<32x128xf32>
    %9 = tpu.matmul %7, %8, %cst_3 {dimension_numbers = #tpu.dot_dimension_numbers<[1], [0], [0], [1], [0, 0, 1, 1], [], []>} : vector<32x128xf32>, vector<128x128xf32>, vector<32x128xf32> -> vector<32x128xf32>
    %c0_4 = arith.constant 0 : index
    %c0_5 = arith.constant 0 : index
    %10 = vector.load %arg3[%c0_4, %c0_5] : memref<1x128xf32, #tpu.memory_space<vmem>>, vector<1x128xf32>
    %11 = vector.broadcast %10 : vector<1x128xf32> to vector<32x128xf32>
    %12 = arith.addf %9, %11 : vector<32x128xf32>
    %c0_6 = arith.constant 0 : index
    %c0_7 = arith.constant 0 : index
    %13 = vector.load %arg4[%c0_6, %c0_7] : memref<32x128xf32, #tpu.memory_space<vmem>>, vector<32x128xf32>
    tpu.vector_store %arg4[%c0_6, %c0_7], %12 {strides = array<i32>} : memref<32x128xf32, #tpu.memory_space<vmem>>, vector<32x128xf32>,
    return
  }
  func.func @transform_0(%arg0: i32) -> (i32, i32) {
    %c0_i32 = arith.constant 0 : i32
    %c0_i32_0 = arith.constant 0 : i32
    return %arg0, %c0_i32 : i32, i32
  }
  func.func @transform_1(%arg0: i32) -> (i32, i32) {
    %c0_i32 = arith.constant 0 : i32
    %c0_i32_0 = arith.constant 0 : i32
    %c0_i32_1 = arith.constant 0 : i32
    return %c0_i32, %c0_i32_0 : i32, i32
  }
  func.func @transform_2(%arg0: i32) -> (i32, i32) {
    %c0_i32 = arith.constant 0 : i32
    %c0_i32_0 = arith.constant 0 : i32
    %c0_i32_1 = arith.constant 0 : i32
    return %c0_i32, %c0_i32_0 : i32, i32
  }
  func.func @transform_3(%arg0: i32) -> (i32, i32) {
    %c0_i32 = arith.constant 0 : i32
    %c0_i32_0 = arith.constant 0 : i32
    return %arg0, %c0_i32 : i32, i32
  }
}

</mosaic_0001>

<llo_original>
// kernel: fasttext_forward.1
$region0: #{fasttext_forward.1}
  #allocation0 [shape = 'u32[]', space=smem, size = 0x4, offset = 0x4, fixed_abs, tag = 'smem constant byte address 0x4 - core index']
  #allocation1 [shape = 'u32[144,128]{1,0:T(1,128)}', space=vmem, size = 0x12000, scoped, tag = 'internal scratch']
  %s0 = inlined_call_operand.vmem [shape: s32[32,16], index: 0, kind: input, shape index: {}]
  %s1 = inlined_call_operand.vmem [shape: f32[128,128], index: 1, kind: input, shape index: {}]
  %s2 = inlined_call_operand.vmem [shape: f32[1,128], index: 2, kind: input, shape index: {}]
  %s3 = inlined_call_operand.vmem [shape: f32[32,128], index: 3, kind: output, shape index: {}]
  %s4 = sld [smem:[#allocation0]]
  $region22: #{fasttext_forward.1} parent=0
    _
  %s6 = ssub.s32 1, %s4
  %s7 = scalar_select 0, %s6, %s4
  // Predicated region
  $region2: #{fasttext_forward.1} parent=0 // pred_check
    _
  $region3: #{fasttext_forward.1} parent=0 // pred_check_branch
    %9 = sbr.rel (0) target = $region5
  $region4: #{fasttext_forward.1} parent=0 // pred_region
    _
  $region5: #{fasttext_forward.1} parent=0 // pred_fallthru
    _
  // Predicated region
  $region6: #{fasttext_forward.1} parent=0 // pred_check
    _
  $region7: #{fasttext_forward.1} parent=0 // pred_check_branch
    %11 = sbr.rel (0) target = $region9
  $region8: #{fasttext_forward.1} parent=0 // pred_region
    _
  $region9: #{fasttext_forward.1} parent=0 // pred_fallthru
    _
  // Predicated region
  $region10: #{fasttext_forward.1} parent=0 // pred_check
    _
  $region11: #{fasttext_forward.1} parent=0 // pred_check_branch
    %13 = sbr.rel (0) target = $region13
  $region12: #{fasttext_forward.1} parent=0 // pred_region
    _
  $region13: #{fasttext_forward.1} parent=0 // pred_fallthru
    _
  %v14 = vld [vmem:[%s0] sm:$0xff]
  %v15 = vld [vmem:[%s0 + $0x8] sm:$0xff]
  %v16 = vld [vmem:[%s0 + $0x10] sm:$0xff]
  %v17 = vld [vmem:[%s0 + $0x18] sm:$0xff]
  %v18 = vlaneseq
  %v19 = vand.u32 %v18, 127
  %v20 = vlaneseq
  %v21 = vshrl.u32 %v20, 7
  %v22 = vsub.s32 0, %v21
  %v23 = vrot.slane %v14, %v22
  %25 = vbcast.lane.b32.xlu0 %v23, 256
  %v26 = vpop.permute.xlu0 %25
  %s28 = sor.u32 256, 8
  %29 = vbcast.lane.b32.xlu0 %v23, %s28
  %v30 = vpop.permute.xlu0 %29
  %v31 = vlaneseq
  %v32 = vshrl.u32 %v31, 7
  %v33 = vsub.s32 1, %v32
  %v34 = vrot.slane %v14, %v33
  %36 = vbcast.lane.b32.xlu0 %v34, 256
  %v37 = vpop.permute.xlu0 %36
  %s39 = sor.u32 256, 8
  %40 = vbcast.lane.b32.xlu0 %v34, %s39
  %v41 = vpop.permute.xlu0 %40
  %v42 = vlaneseq
  %v43 = vshrl.u32 %v42, 7
  %v44 = vsub.s32 2, %v43
  %v45 = vrot.slane %v14, %v44
  %47 = vbcast.lane.b32.xlu0 %v45, 256
  %v48 = vpop.permute.xlu0 %47
  %s50 = sor.u32 256, 8
  %51 = vbcast.lane.b32.xlu0 %v45, %s50
  %v52 = vpop.permute.xlu0 %51
  %v53 = vlaneseq
  %v54 = vshrl.u32 %v53, 7
  %v55 = vsub.s32 3, %v54
  %v56 = vrot.slane %v14, %v55
  %58 = vbcast.lane.b32.xlu0 %v56, 256
  %v59 = vpop.permute.xlu0 %58
  %s61 = sor.u32 256, 8
  %62 = vbcast.lane.b32.xlu0 %v56, %s61
  %v63 = vpop.permute.xlu0 %62
  %v64 = vlaneseq
  %v65 = vshrl.u32 %v64, 7
  %v66 = vsub.s32 4, %v65
  %v67 = vrot.slane %v14, %v66
  %69 = vbcast.lane.b32.xlu0 %v67, 256
  %v70 = vpop.permute.xlu0 %69
  %s72 = sor.u32 256, 8
  %73 = vbcast.lane.b32.xlu0 %v67, %s72
  %v74 = vpop.permute.xlu0 %73
  %v75 = vlaneseq
  %v76 = vshrl.u32 %v75, 7
  %v77 = vsub.s32 5, %v76
  %v78 = vrot.slane %v14, %v77
  %80 = vbcast.lane.b32.xlu0 %v78, 256
  %v81 = vpop.permute.xlu0 %80
  %s83 = sor.u32 256, 8
  %84 = vbcast.lane.b32.xlu0 %v78, %s83
  %v85 = vpop.permute.xlu0 %84
  %v86 = vlaneseq
  %v87 = vshrl.u32 %v86, 7
  %v88 = vsub.s32 6, %v87
  %v89 = vrot.slane %v14, %v88
  %91 = vbcast.lane.b32.xlu0 %v89, 256
  %v92 = vpop.permute.xlu0 %91
  %s94 = sor.u32 256, 8
  %95 = vbcast.lane.b32.xlu0 %v89, %s94
  %v96 = vpop.permute.xlu0 %95
  %v97 = vlaneseq
  %v98 = vshrl.u32 %v97, 7
  %v99 = vsub.s32 7, %v98
  %v100 = vrot.slane %v14, %v99
  %102 = vbcast.lane.b32.xlu0 %v100, 256
  %v103 = vpop.permute.xlu0 %102
  %s105 = sor.u32 256, 8
  %106 = vbcast.lane.b32.xlu0 %v100, %s105
  %v107 = vpop.permute.xlu0 %106
  %v108 = vlaneseq
  %v109 = vshrl.u32 %v108, 7
  %v110 = vsub.s32 0, %v109
  %v111 = vrot.slane %v15, %v110
  %113 = vbcast.lane.b32.xlu0 %v111, 256
  %v114 = vpop.permute.xlu0 %113
  %s116 = sor.u32 256, 8
  %117 = vbcast.lane.b32.xlu0 %v111, %s116
  %v118 = vpop.permute.xlu0 %117
  %v119 = vlaneseq
  %v120 = vshrl.u32 %v119, 7
  %v121 = vsub.s32 1, %v120
  %v122 = vrot.slane %v15, %v121
  %124 = vbcast.lane.b32.xlu0 %v122, 256
  %v125 = vpop.permute.xlu0 %124
  %s127 = sor.u32 256, 8
  %128 = vbcast.lane.b32.xlu0 %v122, %s127
  %v129 = vpop.permute.xlu0 %128
  %v130 = vlaneseq
  %v131 = vshrl.u32 %v130, 7
  %v132 = vsub.s32 2, %v131
  %v133 = vrot.slane %v15, %v132
  %135 = vbcast.lane.b32.xlu0 %v133, 256
  %v136 = vpop.permute.xlu0 %135
  %s138 = sor.u32 256, 8
  %139 = vbcast.lane.b32.xlu0 %v133, %s138
  %v140 = vpop.permute.xlu0 %139
  %v141 = vlaneseq
  %v142 = vshrl.u32 %v141, 7
  %v143 = vsub.s32 3, %v142
  %v144 = vrot.slane %v15, %v143
  %146 = vbcast.lane.b32.xlu0 %v144, 256
  %v147 = vpop.permute.xlu0 %146
  %s149 = sor.u32 256, 8
  %150 = vbcast.lane.b32.xlu0 %v144, %s149
  %v151 = vpop.permute.xlu0 %150
  %v152 = vlaneseq
  %v153 = vshrl.u32 %v152, 7
  %v154 = vsub.s32 4, %v153
  %v155 = vrot.slane %v15, %v154
  %157 = vbcast.lane.b32.xlu0 %v155, 256
  %v158 = vpop.permute.xlu0 %157
  %s160 = sor.u32 256, 8
  %161 = vbcast.lane.b32.xlu0 %v155, %s160
  %v162 = vpop.permute.xlu0 %161
  %v163 = vlaneseq
  %v164 = vshrl.u32 %v163, 7
  %v165 = vsub.s32 5, %v164
  %v166 = vrot.slane %v15, %v165
  %168 = vbcast.lane.b32.xlu0 %v166, 256
  %v169 = vpop.permute.xlu0 %168
  %s171 = sor.u32 256, 8
  %172 = vbcast.lane.b32.xlu0 %v166, %s171
  %v173 = vpop.permute.xlu0 %172
  %v174 = vlaneseq
  %v175 = vshrl.u32 %v174, 7
  %v176 = vsub.s32 6, %v175
  %v177 = vrot.slane %v15, %v176
  %179 = vbcast.lane.b32.xlu0 %v177, 256
  %v180 = vpop.permute.xlu0 %179
  %s182 = sor.u32 256, 8
  %183 = vbcast.lane.b32.xlu0 %v177, %s182
  %v184 = vpop.permute.xlu0 %183
  %v185 = vlaneseq
  %v186 = vshrl.u32 %v185, 7
  %v187 = vsub.s32 7, %v186
  %v188 = vrot.slane %v15, %v187
  %190 = vbcast.lane.b32.xlu0 %v188, 256
  %v191 = vpop.permute.xlu0 %190
  %s193 = sor.u32 256, 8
  %194 = vbcast.lane.b32.xlu0 %v188, %s193
  %v195 = vpop.permute.xlu0 %194
  %v196 = vlaneseq
  %v197 = vshrl.u32 %v196, 7
  %v198 = vsub.s32 0, %v197
  %v199 = vrot.slane %v16, %v198
  %201 = vbcast.lane.b32.xlu0 %v199, 256
  %v202 = vpop.permute.xlu0 %201
  %s204 = sor.u32 256, 8
  %205 = vbcast.lane.b32.xlu0 %v199, %s204
  %v206 = vpop.permute.xlu0 %205
  %v207 = vlaneseq
  %v208 = vshrl.u32 %v207, 7
  %v209 = vsub.s32 1, %v208
  %v210 = vrot.slane %v16, %v209
  %212 = vbcast.lane.b32.xlu0 %v210, 256
  %v213 = vpop.permute.xlu0 %212
  %s215 = sor.u32 256, 8
  %216 = vbcast.lane.b32.xlu0 %v210, %s215
  %v217 = vpop.permute.xlu0 %216
  %v218 = vlaneseq
  %v219 = vshrl.u32 %v218, 7
  %v220 = vsub.s32 2, %v219
  %v221 = vrot.slane %v16, %v220
  %223 = vbcast.lane.b32.xlu0 %v221, 256
  %v224 = vpop.permute.xlu0 %223
  %s226 = sor.u32 256, 8
  %227 = vbcast.lane.b32.xlu0 %v221, %s226
  %v228 = vpop.permute.xlu0 %227
  %v229 = vlaneseq
  %v230 = vshrl.u32 %v229, 7
  %v231 = vsub.s32 3, %v230
  %v232 = vrot.slane %v16, %v231
  %234 = vbcast.lane.b32.xlu0 %v232, 256
  %v235 = vpop.permute.xlu0 %234
  %s237 = sor.u32 256, 8
  %238 = vbcast.lane.b32.xlu0 %v232, %s237
  %v239 = vpop.permute.xlu0 %238
  %v240 = vlaneseq
  %v241 = vshrl.u32 %v240, 7
  %v242 = vsub.s32 4, %v241
  %v243 = vrot.slane %v16, %v242
  %245 = vbcast.lane.b32.xlu0 %v243, 256
  %v246 = vpop.permute.xlu0 %245
  %s248 = sor.u32 256, 8
  %249 = vbcast.lane.b32.xlu0 %v243, %s248
  %v250 = vpop.permute.xlu0 %249
  %v251 = vlaneseq
  %v252 = vshrl.u32 %v251, 7
  %v253 = vsub.s32 5, %v252
  %v254 = vrot.slane %v16, %v253
  %256 = vbcast.lane.b32.xlu0 %v254, 256
  %v257 = vpop.permute.xlu0 %256
  %s259 = sor.u32 256, 8
  %260 = vbcast.lane.b32.xlu0 %v254, %s259
  %v261 = vpop.permute.xlu0 %260
  %v262 = vlaneseq
  %v263 = vshrl.u32 %v262, 7
  %v264 = vsub.s32 6, %v263
  %v265 = vrot.slane %v16, %v264
  %267 = vbcast.lane.b32.xlu0 %v265, 256
  %v268 = vpop.permute.xlu0 %267
  %s270 = sor.u32 256, 8
  %271 = vbcast.lane.b32.xlu0 %v265, %s270
  %v272 = vpop.permute.xlu0 %271
  %v273 = vlaneseq
  %v274 = vshrl.u32 %v273, 7
  %v275 = vsub.s32 7, %v274
  %v276 = vrot.slane %v16, %v275
  %278 = vbcast.lane.b32.xlu0 %v276, 256
  %v279 = vpop.permute.xlu0 %278
  %s281 = sor.u32 256, 8
  %282 = vbcast.lane.b32.xlu0 %v276, %s281
  %v283 = vpop.permute.xlu0 %282
  %v284 = vlaneseq
  %v285 = vshrl.u32 %v284, 7
  %v286 = vsub.s32 0, %v285
  %v287 = vrot.slane %v17, %v286
  %289 = vbcast.lane.b32.xlu0 %v287, 256
  %v290 = vpop.permute.xlu0 %289
  %s292 = sor.u32 256, 8
  %293 = vbcast.lane.b32.xlu0 %v287, %s292
  %v294 = vpop.permute.xlu0 %293
  %v295 = vlaneseq
  %v296 = vshrl.u32 %v295, 7
  %v297 = vsub.s32 1, %v296
  %v298 = vrot.slane %v17, %v297
  %300 = vbcast.lane.b32.xlu0 %v298, 256
  %v301 = vpop.permute.xlu0 %300
  %s303 = sor.u32 256, 8
  %304 = vbcast.lane.b32.xlu0 %v298, %s303
  %v305 = vpop.permute.xlu0 %304
  %v306 = vlaneseq
  %v307 = vshrl.u32 %v306, 7
  %v308 = vsub.s32 2, %v307
  %v309 = vrot.slane %v17, %v308
  %311 = vbcast.lane.b32.xlu0 %v309, 256
  %v312 = vpop.permute.xlu0 %311
  %s314 = sor.u32 256, 8
  %315 = vbcast.lane.b32.xlu0 %v309, %s314
  %v316 = vpop.permute.xlu0 %315
  %v317 = vlaneseq
  %v318 = vshrl.u32 %v317, 7
  %v319 = vsub.s32 3, %v318
  %v320 = vrot.slane %v17, %v319
  %322 = vbcast.lane.b32.xlu0 %v320, 256
  %v323 = vpop.permute.xlu0 %322
  %s325 = sor.u32 256, 8
  %326 = vbcast.lane.b32.xlu0 %v320, %s325
  %v327 = vpop.permute.xlu0 %326
  %v328 = vlaneseq
  %v329 = vshrl.u32 %v328, 7
  %v330 = vsub.s32 4, %v329
  %v331 = vrot.slane %v17, %v330
  %333 = vbcast.lane.b32.xlu0 %v331, 256
  %v334 = vpop.permute.xlu0 %333
  %s336 = sor.u32 256, 8
  %337 = vbcast.lane.b32.xlu0 %v331, %s336
  %v338 = vpop.permute.xlu0 %337
  %v339 = vlaneseq
  %v340 = vshrl.u32 %v339, 7
  %v341 = vsub.s32 5, %v340
  %v342 = vrot.slane %v17, %v341
  %344 = vbcast.lane.b32.xlu0 %v342, 256
  %v345 = vpop.permute.xlu0 %344
  %s347 = sor.u32 256, 8
  %348 = vbcast.lane.b32.xlu0 %v342, %s347
  %v349 = vpop.permute.xlu0 %348
  %v350 = vlaneseq
  %v351 = vshrl.u32 %v350, 7
  %v352 = vsub.s32 6, %v351
  %v353 = vrot.slane %v17, %v352
  %355 = vbcast.lane.b32.xlu0 %v353, 256
  %v356 = vpop.permute.xlu0 %355
  %s358 = sor.u32 256, 8
  %359 = vbcast.lane.b32.xlu0 %v353, %s358
  %v360 = vpop.permute.xlu0 %359
  %v361 = vlaneseq
  %v362 = vshrl.u32 %v361, 7
  %v363 = vsub.s32 7, %v362
  %v364 = vrot.slane %v17, %v363
  %366 = vbcast.lane.b32.xlu0 %v364, 256
  %v367 = vpop.permute.xlu0 %366
  %s369 = sor.u32 256, 8
  %370 = vbcast.lane.b32.xlu0 %v364, %s369
  %v371 = vpop.permute.xlu0 %370
  %vm372 = vcmp.eq.s32.totalorder %v26, %v19
  %vm373 = vcmp.eq.s32.totalorder %v30, %v19
  %vm374 = vcmp.eq.s32.totalorder %v37, %v19
  %vm375 = vcmp.eq.s32.totalorder %v41, %v19
  %vm376 = vcmp.eq.s32.totalorder %v48, %v19
  %vm377 = vcmp.eq.s32.totalorder %v52, %v19
  %vm378 = vcmp.eq.s32.totalorder %v59, %v19
  %vm379 = vcmp.eq.s32.totalorder %v63, %v19
  %vm380 = vcmp.eq.s32.totalorder %v70, %v19
  %vm381 = vcmp.eq.s32.totalorder %v74, %v19
  %vm382 = vcmp.eq.s32.totalorder %v81, %v19
  %vm383 = vcmp.eq.s32.totalorder %v85, %v19
  %vm384 = vcmp.eq.s32.totalorder %v92, %v19
  %vm385 = vcmp.eq.s32.totalorder %v96, %v19
  %vm386 = vcmp.eq.s32.totalorder %v103, %v19
  %vm387 = vcmp.eq.s32.totalorder %v107, %v19
  %vm388 = vcmp.eq.s32.totalorder %v114, %v19
  %vm389 = vcmp.eq.s32.totalorder %v118, %v19
  %vm390 = vcmp.eq.s32.totalorder %v125, %v19
  %vm391 = vcmp.eq.s32.totalorder %v129, %v19
  %vm392 = vcmp.eq.s32.totalorder %v136, %v19
  %vm393 = vcmp.eq.s32.totalorder %v140, %v19
  %vm394 = vcmp.eq.s32.totalorder %v147, %v19
  %vm395 = vcmp.eq.s32.totalorder %v151, %v19
  %vm396 = vcmp.eq.s32.totalorder %v158, %v19
  %vm397 = vcmp.eq.s32.totalorder %v162, %v19
  %vm398 = vcmp.eq.s32.totalorder %v169, %v19
  %vm399 = vcmp.eq.s32.totalorder %v173, %v19
  %vm400 = vcmp.eq.s32.totalorder %v180, %v19
  %vm401 = vcmp.eq.s32.totalorder %v184, %v19
  %vm402 = vcmp.eq.s32.totalorder %v191, %v19
  %vm403 = vcmp.eq.s32.totalorder %v195, %v19
  %vm404 = vcmp.eq.s32.totalorder %v202, %v19
  %vm405 = vcmp.eq.s32.totalorder %v206, %v19
  %vm406 = vcmp.eq.s32.totalorder %v213, %v19
  %vm407 = vcmp.eq.s32.totalorder %v217, %v19
  %vm408 = vcmp.eq.s32.totalorder %v224, %v19
  %vm409 = vcmp.eq.s32.totalorder %v228, %v19
  %vm410 = vcmp.eq.s32.totalorder %v235, %v19
  %vm411 = vcmp.eq.s32.totalorder %v239, %v19
  %vm412 = vcmp.eq.s32.totalorder %v246, %v19
  %vm413 = vcmp.eq.s32.totalorder %v250, %v19
  %vm414 = vcmp.eq.s32.totalorder %v257, %v19
  %vm415 = vcmp.eq.s32.totalorder %v261, %v19
  %vm416 = vcmp.eq.s32.totalorder %v268, %v19
  %vm417 = vcmp.eq.s32.totalorder %v272, %v19
  %vm418 = vcmp.eq.s32.totalorder %v279, %v19
  %vm419 = vcmp.eq.s32.totalorder %v283, %v19
  %vm420 = vcmp.eq.s32.totalorder %v290, %v19
  %vm421 = vcmp.eq.s32.totalorder %v294, %v19
  %vm422 = vcmp.eq.s32.totalorder %v301, %v19
  %vm423 = vcmp.eq.s32.totalorder %v305, %v19
  %vm424 = vcmp.eq.s32.totalorder %v312, %v19
  %vm425 = vcmp.eq.s32.totalorder %v316, %v19
  %vm426 = vcmp.eq.s32.totalorder %v323, %v19
  %vm427 = vcmp.eq.s32.totalorder %v327, %v19
  %vm428 = vcmp.eq.s32.totalorder %v334, %v19
  %vm429 = vcmp.eq.s32.totalorder %v338, %v19
  %vm430 = vcmp.eq.s32.totalorder %v345, %v19
  %vm431 = vcmp.eq.s32.totalorder %v349, %v19
  %vm432 = vcmp.eq.s32.totalorder %v356, %v19
  %vm433 = vcmp.eq.s32.totalorder %v360, %v19
  %vm434 = vcmp.eq.s32.totalorder %v367, %v19
  %vm435 = vcmp.eq.s32.totalorder %v371, %v19
  %v436 = vsel %vm372, 1, 0
  %v437 = vsel %vm373, 1, 0
  %v438 = vsel %vm374, 1, 0
  %v439 = vsel %vm375, 1, 0
  %v440 = vsel %vm376, 1, 0
  %v441 = vsel %vm377, 1, 0
  %v442 = vsel %vm378, 1, 0
  %v443 = vsel %vm379, 1, 0
  %v444 = vsel %vm380, 1, 0
  %v445 = vsel %vm381, 1, 0
  %v446 = vsel %vm382, 1, 0
  %v447 = vsel %vm383, 1, 0
  %v448 = vsel %vm384, 1, 0
  %v449 = vsel %vm385, 1, 0
  %v450 = vsel %vm386, 1, 0
  %v451 = vsel %vm387, 1, 0
  %v452 = vsel %vm388, 1, 0
  %v453 = vsel %vm389, 1, 0
  %v454 = vsel %vm390, 1, 0
  %v455 = vsel %vm391, 1, 0
  %v456 = vsel %vm392, 1, 0
  %v457 = vsel %vm393, 1, 0
  %v458 = vsel %vm394, 1, 0
  %v459 = vsel %vm395, 1, 0
  %v460 = vsel %vm396, 1, 0
  %v461 = vsel %vm397, 1, 0
  %v462 = vsel %vm398, 1, 0
  %v463 = vsel %vm399, 1, 0
  %v464 = vsel %vm400, 1, 0
  %v465 = vsel %vm401, 1, 0
  %v466 = vsel %vm402, 1, 0
  %v467 = vsel %vm403, 1, 0
  %v468 = vsel %vm404, 1, 0
  %v469 = vsel %vm405, 1, 0
  %v470 = vsel %vm406, 1, 0
  %v471 = vsel %vm407, 1, 0
  %v472 = vsel %vm408, 1, 0
  %v473 = vsel %vm409, 1, 0
  %v474 = vsel %vm410, 1, 0
  %v475 = vsel %vm411, 1, 0
  %v476 = vsel %vm412, 1, 0
  %v477 = vsel %vm413, 1, 0
  %v478 = vsel %vm414, 1, 0
  %v479 = vsel %vm415, 1, 0
  %v480 = vsel %vm416, 1, 0
  %v481 = vsel %vm417, 1, 0
  %v482 = vsel %vm418, 1, 0
  %v483 = vsel %vm419, 1, 0
  %v484 = vsel %vm420, 1, 0
  %v485 = vsel %vm421, 1, 0
  %v486 = vsel %vm422, 1, 0
  %v487 = vsel %vm423, 1, 0
  %v488 = vsel %vm424, 1, 0
  %v489 = vsel %vm425, 1, 0
  %v490 = vsel %vm426, 1, 0
  %v491 = vsel %vm427, 1, 0
  %v492 = vsel %vm428, 1, 0
  %v493 = vsel %vm429, 1, 0
  %v494 = vsel %vm430, 1, 0
  %v495 = vsel %vm431, 1, 0
  %v496 = vsel %vm432, 1, 0
  %v497 = vsel %vm433, 1, 0
  %v498 = vsel %vm434, 1, 0
  %v499 = vsel %vm435, 1, 0
  %v500 = vcvt.s32.f32 %v436
  %v501 = vcvt.s32.f32 %v437
  %v502 = vcvt.s32.f32 %v438
  %v503 = vcvt.s32.f32 %v439
  %v504 = vcvt.s32.f32 %v440
  %v505 = vcvt.s32.f32 %v441
  %v506 = vcvt.s32.f32 %v442
  %v507 = vcvt.s32.f32 %v443
  %v508 = vcvt.s32.f32 %v444
  %v509 = vcvt.s32.f32 %v445
  %v510 = vcvt.s32.f32 %v446
  %v511 = vcvt.s32.f32 %v447
  %v512 = vcvt.s32.f32 %v448
  %v513 = vcvt.s32.f32 %v449
  %v514 = vcvt.s32.f32 %v450
  %v515 = vcvt.s32.f32 %v451
  %v516 = vcvt.s32.f32 %v452
  %v517 = vcvt.s32.f32 %v453
  %v518 = vcvt.s32.f32 %v454
  %v519 = vcvt.s32.f32 %v455
  %v520 = vcvt.s32.f32 %v456
  %v521 = vcvt.s32.f32 %v457
  %v522 = vcvt.s32.f32 %v458
  %v523 = vcvt.s32.f32 %v459
  %v524 = vcvt.s32.f32 %v460
  %v525 = vcvt.s32.f32 %v461
  %v526 = vcvt.s32.f32 %v462
  %v527 = vcvt.s32.f32 %v463
  %v528 = vcvt.s32.f32 %v464
  %v529 = vcvt.s32.f32 %v465
  %v530 = vcvt.s32.f32 %v466
  %v531 = vcvt.s32.f32 %v467
  %v532 = vcvt.s32.f32 %v468
  %v533 = vcvt.s32.f32 %v469
  %v534 = vcvt.s32.f32 %v470
  %v535 = vcvt.s32.f32 %v471
  %v536 = vcvt.s32.f32 %v472
  %v537 = vcvt.s32.f32 %v473
  %v538 = vcvt.s32.f32 %v474
  %v539 = vcvt.s32.f32 %v475
  %v540 = vcvt.s32.f32 %v476
  %v541 = vcvt.s32.f32 %v477
  %v542 = vcvt.s32.f32 %v478
  %v543 = vcvt.s32.f32 %v479
  %v544 = vcvt.s32.f32 %v480
  %v545 = vcvt.s32.f32 %v481
  %v546 = vcvt.s32.f32 %v482
  %v547 = vcvt.s32.f32 %v483
  %v548 = vcvt.s32.f32 %v484
  %v549 = vcvt.s32.f32 %v485
  %v550 = vcvt.s32.f32 %v486
  %v551 = vcvt.s32.f32 %v487
  %v552 = vcvt.s32.f32 %v488
  %v553 = vcvt.s32.f32 %v489
  %v554 = vcvt.s32.f32 %v490
  %v555 = vcvt.s32.f32 %v491
  %v556 = vcvt.s32.f32 %v492
  %v557 = vcvt.s32.f32 %v493
  %v558 = vcvt.s32.f32 %v494
  %v559 = vcvt.s32.f32 %v495
  %v560 = vcvt.s32.f32 %v496
  %v561 = vcvt.s32.f32 %v497
  %v562 = vcvt.s32.f32 %v498
  %v563 = vcvt.s32.f32 %v499
  %v564 = vadd.f32 %v500, %v501
  %v565 = vrot.slane %v564, 4
  %v566 = vadd.f32 %v564, %v565
  %v567 = vrot.slane %v566, 2
  %v568 = vadd.f32 %v566, %v567
  %v569 = vrot.slane %v568, 1
  %v570 = vadd.f32 %v568, %v569
  %v571 = vadd.f32 %v502, %v503
  %v572 = vrot.slane %v571, 4
  %v573 = vadd.f32 %v571, %v572
  %v574 = vrot.slane %v573, 2
  %v575 = vadd.f32 %v573, %v574
  %v576 = vrot.slane %v575, 1
  %v577 = vadd.f32 %v575, %v576
  %v578 = vadd.f32 %v504, %v505
  %v579 = vrot.slane %v578, 4
  %v580 = vadd.f32 %v578, %v579
  %v581 = vrot.slane %v580, 2
  %v582 = vadd.f32 %v580, %v581
  %v583 = vrot.slane %v582, 1
  %v584 = vadd.f32 %v582, %v583
  %v585 = vadd.f32 %v506, %v507
  %v586 = vrot.slane %v585, 4
  %v587 = vadd.f32 %v585, %v586
  %v588 = vrot.slane %v587, 2
  %v589 = vadd.f32 %v587, %v588
  %v590 = vrot.slane %v589, 1
  %v591 = vadd.f32 %v589, %v590
  %v592 = vadd.f32 %v508, %v509
  %v593 = vrot.slane %v592, 4
  %v594 = vadd.f32 %v592, %v593
  %v595 = vrot.slane %v594, 2
  %v596 = vadd.f32 %v594, %v595
  %v597 = vrot.slane %v596, 1
  %v598 = vadd.f32 %v596, %v597
  %v599 = vadd.f32 %v510, %v511
  %v600 = vrot.slane %v599, 4
  %v601 = vadd.f32 %v599, %v600
  %v602 = vrot.slane %v601, 2
  %v603 = vadd.f32 %v601, %v602
  %v604 = vrot.slane %v603, 1
  %v605 = vadd.f32 %v603, %v604
  %v606 = vadd.f32 %v512, %v513
  %v607 = vrot.slane %v606, 4
  %v608 = vadd.f32 %v606, %v607
  %v609 = vrot.slane %v608, 2
  %v610 = vadd.f32 %v608, %v609
  %v611 = vrot.slane %v610, 1
  %v612 = vadd.f32 %v610, %v611
  %v613 = vadd.f32 %v514, %v515
  %v614 = vrot.slane %v613, 4
  %v615 = vadd.f32 %v613, %v614
  %v616 = vrot.slane %v615, 2
  %v617 = vadd.f32 %v615, %v616
  %v618 = vrot.slane %v617, 1
  %v619 = vadd.f32 %v617, %v618
  %v620 = vadd.f32 %v516, %v517
  %v621 = vrot.slane %v620, 4
  %v622 = vadd.f32 %v620, %v621
  %v623 = vrot.slane %v622, 2
  %v624 = vadd.f32 %v622, %v623
  %v625 = vrot.slane %v624, 1
  %v626 = vadd.f32 %v624, %v625
  %v627 = vadd.f32 %v518, %v519
  %v628 = vrot.slane %v627, 4
  %v629 = vadd.f32 %v627, %v628
  %v630 = vrot.slane %v629, 2
  %v631 = vadd.f32 %v629, %v630
  %v632 = vrot.slane %v631, 1
  %v633 = vadd.f32 %v631, %v632
  %v634 = vadd.f32 %v520, %v521
  %v635 = vrot.slane %v634, 4
  %v636 = vadd.f32 %v634, %v635
  %v637 = vrot.slane %v636, 2
  %v638 = vadd.f32 %v636, %v637
  %v639 = vrot.slane %v638, 1
  %v640 = vadd.f32 %v638, %v639
  %v641 = vadd.f32 %v522, %v523
  %v642 = vrot.slane %v641, 4
  %v643 = vadd.f32 %v641, %v642
  %v644 = vrot.slane %v643, 2
  %v645 = vadd.f32 %v643, %v644
  %v646 = vrot.slane %v645, 1
  %v647 = vadd.f32 %v645, %v646
  %v648 = vadd.f32 %v524, %v525
  %v649 = vrot.slane %v648, 4
  %v650 = vadd.f32 %v648, %v649
  %v651 = vrot.slane %v650, 2
  %v652 = vadd.f32 %v650, %v651
  %v653 = vrot.slane %v652, 1
  %v654 = vadd.f32 %v652, %v653
  %v655 = vadd.f32 %v526, %v527
  %v656 = vrot.slane %v655, 4
  %v657 = vadd.f32 %v655, %v656
  %v658 = vrot.slane %v657, 2
  %v659 = vadd.f32 %v657, %v658
  %v660 = vrot.slane %v659, 1
  %v661 = vadd.f32 %v659, %v660
  %v662 = vadd.f32 %v528, %v529
  %v663 = vrot.slane %v662, 4
  %v664 = vadd.f32 %v662, %v663
  %v665 = vrot.slane %v664, 2
  %v666 = vadd.f32 %v664, %v665
  %v667 = vrot.slane %v666, 1
  %v668 = vadd.f32 %v666, %v667
  %v669 = vadd.f32 %v530, %v531
  %v670 = vrot.slane %v669, 4
  %v671 = vadd.f32 %v669, %v670
  %v672 = vrot.slane %v671, 2
  %v673 = vadd.f32 %v671, %v672
  %v674 = vrot.slane %v673, 1
  %v675 = vadd.f32 %v673, %v674
  %v676 = vadd.f32 %v532, %v533
  %v677 = vrot.slane %v676, 4
  %v678 = vadd.f32 %v676, %v677
  %v679 = vrot.slane %v678, 2
  %v680 = vadd.f32 %v678, %v679
  %v681 = vrot.slane %v680, 1
  %v682 = vadd.f32 %v680, %v681
  %v683 = vadd.f32 %v534, %v535
  %v684 = vrot.slane %v683, 4
  %v685 = vadd.f32 %v683, %v684
  %v686 = vrot.slane %v685, 2
  %v687 = vadd.f32 %v685, %v686
  %v688 = vrot.slane %v687, 1
  %v689 = vadd.f32 %v687, %v688
  %v690 = vadd.f32 %v536, %v537
  %v691 = vrot.slane %v690, 4
  %v692 = vadd.f32 %v690, %v691
  %v693 = vrot.slane %v692, 2
  %v694 = vadd.f32 %v692, %v693
  %v695 = vrot.slane %v694, 1
  %v696 = vadd.f32 %v694, %v695
  %v697 = vadd.f32 %v538, %v539
  %v698 = vrot.slane %v697, 4
  %v699 = vadd.f32 %v697, %v698
  %v700 = vrot.slane %v699, 2
  %v701 = vadd.f32 %v699, %v700
  %v702 = vrot.slane %v701, 1
  %v703 = vadd.f32 %v701, %v702
  %v704 = vadd.f32 %v540, %v541
  %v705 = vrot.slane %v704, 4
  %v706 = vadd.f32 %v704, %v705
  %v707 = vrot.slane %v706, 2
  %v708 = vadd.f32 %v706, %v707
  %v709 = vrot.slane %v708, 1
  %v710 = vadd.f32 %v708, %v709
  %v711 = vadd.f32 %v542, %v543
  %v712 = vrot.slane %v711, 4
  %v713 = vadd.f32 %v711, %v712
  %v714 = vrot.slane %v713, 2
  %v715 = vadd.f32 %v713, %v714
  %v716 = vrot.slane %v715, 1
  %v717 = vadd.f32 %v715, %v716
  %v718 = vadd.f32 %v544, %v545
  %v719 = vrot.slane %v718, 4
  %v720 = vadd.f32 %v718, %v719
  %v721 = vrot.slane %v720, 2
  %v722 = vadd.f32 %v720, %v721
  %v723 = vrot.slane %v722, 1
  %v724 = vadd.f32 %v722, %v723
  %v725 = vadd.f32 %v546, %v547
  %v726 = vrot.slane %v725, 4
  %v727 = vadd.f32 %v725, %v726
  %v728 = vrot.slane %v727, 2
  %v729 = vadd.f32 %v727, %v728
  %v730 = vrot.slane %v729, 1
  %v731 = vadd.f32 %v729, %v730
  %v732 = vadd.f32 %v548, %v549
  %v733 = vrot.slane %v732, 4
  %v734 = vadd.f32 %v732, %v733
  %v735 = vrot.slane %v734, 2
  %v736 = vadd.f32 %v734, %v735
  %v737 = vrot.slane %v736, 1
  %v738 = vadd.f32 %v736, %v737
  %v739 = vadd.f32 %v550, %v551
  %v740 = vrot.slane %v739, 4
  %v741 = vadd.f32 %v739, %v740
  %v742 = vrot.slane %v741, 2
  %v743 = vadd.f32 %v741, %v742
  %v744 = vrot.slane %v743, 1
  %v745 = vadd.f32 %v743, %v744
  %v746 = vadd.f32 %v552, %v553
  %v747 = vrot.slane %v746, 4
  %v748 = vadd.f32 %v746, %v747
  %v749 = vrot.slane %v748, 2
  %v750 = vadd.f32 %v748, %v749
  %v751 = vrot.slane %v750, 1
  %v752 = vadd.f32 %v750, %v751
  %v753 = vadd.f32 %v554, %v555
  %v754 = vrot.slane %v753, 4
  %v755 = vadd.f32 %v753, %v754
  %v756 = vrot.slane %v755, 2
  %v757 = vadd.f32 %v755, %v756
  %v758 = vrot.slane %v757, 1
  %v759 = vadd.f32 %v757, %v758
  %v760 = vadd.f32 %v556, %v557
  %v761 = vrot.slane %v760, 4
  %v762 = vadd.f32 %v760, %v761
  %v763 = vrot.slane %v762, 2
  %v764 = vadd.f32 %v762, %v763
  %v765 = vrot.slane %v764, 1
  %v766 = vadd.f32 %v764, %v765
  %v767 = vadd.f32 %v558, %v559
  %v768 = vrot.slane %v767, 4
  %v769 = vadd.f32 %v767, %v768
  %v770 = vrot.slane %v769, 2
  %v771 = vadd.f32 %v769, %v770
  %v772 = vrot.slane %v771, 1
  %v773 = vadd.f32 %v771, %v772
  %v774 = vadd.f32 %v560, %v561
  %v775 = vrot.slane %v774, 4
  %v776 = vadd.f32 %v774, %v775
  %v777 = vrot.slane %v776, 2
  %v778 = vadd.f32 %v776, %v777
  %v779 = vrot.slane %v778, 1
  %v780 = vadd.f32 %v778, %v779
  %v781 = vadd.f32 %v562, %v563
  %v782 = vrot.slane %v781, 4
  %v783 = vadd.f32 %v781, %v782
  %v784 = vrot.slane %v783, 2
  %v785 = vadd.f32 %v783, %v784
  %v786 = vrot.slane %v785, 1
  %v787 = vadd.f32 %v785, %v786
  %v788 = vld [vmem:[%s1] sm:$0xff]
  %v789 = vld [vmem:[%s1 + $0x8] sm:$0xff]
  %v790 = vld [vmem:[%s1 + $0x10] sm:$0xff]
  %v791 = vld [vmem:[%s1 + $0x18] sm:$0xff]
  %v792 = vld [vmem:[%s1 + $0x20] sm:$0xff]
  %v793 = vld [vmem:[%s1 + $0x28] sm:$0xff]
  %v794 = vld [vmem:[%s1 + $0x30] sm:$0xff]
  %v795 = vld [vmem:[%s1 + $0x38] sm:$0xff]
  %v796 = vld [vmem:[%s1 + $0x40] sm:$0xff]
  %v797 = vld [vmem:[%s1 + $0x48] sm:$0xff]
  %v798 = vld [vmem:[%s1 + $0x50] sm:$0xff]
  %v799 = vld [vmem:[%s1 + $0x58] sm:$0xff]
  %v800 = vld [vmem:[%s1 + $0x60] sm:$0xff]
  %v801 = vld [vmem:[%s1 + $0x68] sm:$0xff]
  %v802 = vld [vmem:[%s1 + $0x70] sm:$0xff]
  %v803 = vld [vmem:[%s1 + $0x78] sm:$0xff]
  %v804 = vld [vmem:[%s2] sm:$0x1]
  %v806 = vlaneseq
  %v807 = vshrl.u32 %v806, 7
  %v808 = vsub.s32 0, %v807
  %v809 = vrot.slane %v804, %v808
  %vm843 = vcmask 1041409
  %v844 = vsel %vm843, %v577, %v570
  %vm845 = vcmask 1042434
  %v846 = vsel %vm845, %v584, %v844
  %vm847 = vcmask 1043459
  %v848 = vsel %vm847, %v591, %v846
  %vm849 = vcmask 1044484
  %v850 = vsel %vm849, %v598, %v848
  %vm851 = vcmask 1045509
  %v852 = vsel %vm851, %v605, %v850
  %vm853 = vcmask 1046534
  %v854 = vsel %vm853, %v612, %v852
  %vm855 = vcmask 1047559
  %v856 = vsel %vm855, %v619, %v854
  %v857 = vsel %vm843, %v633, %v626
  %v858 = vsel %vm845, %v640, %v857
  %v859 = vsel %vm847, %v647, %v858
  %v860 = vsel %vm849, %v654, %v859
  %v861 = vsel %vm851, %v661, %v860
  %v862 = vsel %vm853, %v668, %v861
  %v863 = vsel %vm855, %v675, %v862
  %v864 = vsel %vm843, %v689, %v682
  %v865 = vsel %vm845, %v696, %v864
  %v866 = vsel %vm847, %v703, %v865
  %v867 = vsel %vm849, %v710, %v866
  %v868 = vsel %vm851, %v717, %v867
  %v869 = vsel %vm853, %v724, %v868
  %v870 = vsel %vm855, %v731, %v869
  %v871 = vsel %vm843, %v745, %v738
  %v872 = vsel %vm845, %v752, %v871
  %v873 = vsel %vm847, %v759, %v872
  %v874 = vsel %vm849, %v766, %v873
  %v875 = vsel %vm851, %v773, %v874
  %v876 = vsel %vm853, %v780, %v875
  %v877 = vsel %vm855, %v787, %v876
  %882 = vmatprep.subr.mxu0 0.0
  %883 = vmatpush1.msra.mxu0 %v788
  %884 = vmatprep.subr.mxu0 0.0
  %885 = vmatpush1.msra.mxu0 %v789
  %886 = vmatprep.subr.mxu0 0.0
  %887 = vmatpush1.msra.mxu0 %v790
  %888 = vmatprep.subr.mxu0 0.0
  %889 = vmatpush1.msra.mxu0 %v791
  %890 = vmatprep.subr.mxu0 0.0
  %891 = vmatpush1.msra.mxu0 %v792
  %892 = vmatprep.subr.mxu0 0.0
  %893 = vmatpush1.msra.mxu0 %v793
  %894 = vmatprep.subr.mxu0 0.0
  %895 = vmatpush1.msra.mxu0 %v794
  %896 = vmatprep.subr.mxu0 0.0
  %897 = vmatpush1.msra.mxu0 %v795
  %898 = vmatprep.subr.mxu0 0.0
  %899 = vmatpush1.msra.mxu0 %v796
  %900 = vmatprep.subr.mxu0 0.0
  %901 = vmatpush1.msra.mxu0 %v797
  %902 = vmatprep.subr.mxu0 0.0
  %903 = vmatpush1.msra.mxu0 %v798
  %904 = vmatprep.subr.mxu0 0.0
  %905 = vmatpush1.msra.mxu0 %v799
  %906 = vmatprep.subr.mxu0 0.0
  %907 = vmatpush1.msra.mxu0 %v800
  %908 = vmatprep.subr.mxu0 0.0
  %909 = vmatpush1.msra.mxu0 %v801
  %910 = vmatprep.subr.mxu0 0.0
  %911 = vmatpush1.msra.mxu0 %v802
  %912 = vmatprep.subr.mxu0 0.0
  %913 = vmatpush1.msra.mxu0 %v803
  %914 = vmatprep.subr.mxu0 0.0
  %915 = vmatpush1.msra.mxu0 0.0
  %916 = vmatprep.subr.mxu0 0.0
  %917 = vmatpush1.msra.mxu0 0.0
  %918 = vmatprep.subr.mxu0 0.0
  %919 = vmatpush1.msra.mxu0 0.0
  %920 = vmatprep.subr.mxu0 0.0
  %921 = vmatpush1.msra.mxu0 0.0
  %922 = vmatprep.subr.mxu0 0.0
  %923 = vmatpush1.msra.mxu0 0.0
  %924 = vmatprep.subr.mxu0 0.0
  %925 = vmatpush1.msra.mxu0 0.0
  %926 = vmatprep.subr.mxu0 0.0
  %927 = vmatpush1.msra.mxu0 0.0
  %928 = vmatprep.subr.mxu0 0.0
  %929 = vmatpush1.msra.mxu0 0.0
  %930 = vmatprep.subr.mxu0 0.0
  %931 = vmatpush1.msra.mxu0 0.0
  %932 = vmatprep.subr.mxu0 0.0
  %933 = vmatpush1.msra.mxu0 0.0
  %934 = vmatprep.subr.mxu0 0.0
  %935 = vmatpush1.msra.mxu0 0.0
  %936 = vmatprep.subr.mxu0 0.0
  %937 = vmatpush1.msra.mxu0 0.0
  %938 = vmatprep.subr.mxu0 0.0
  %939 = vmatpush1.msra.mxu0 0.0
  %940 = vmatprep.subr.mxu0 0.0
  %941 = vmatpush1.msra.mxu0 0.0
  %942 = vmatprep.subr.mxu0 0.0
  %943 = vmatpush1.msra.mxu0 0.0
  %944 = vmatprep.subr.mxu0 0.0
  %945 = vmatpush1.msra.mxu0 0.0
  %946 = vmatprep.mubr.f32.mxu0 0.0
  %947 = vmatmul.mubr.f32.gmra.mrb[0].mxu0 %v856
  %v948 = vpop.f32.mrb[0].mxu0
  %v949 = vadd.f32 %v809, %v948
  %v950 = vpop.f32.mrb[0].mxu0
  %951 = vmatprep.mubr.f32.mxu0 0.0
  %952 = vmatmul.mubr.f32.gmra.mrb[0].mxu0 %v863
  %v953 = vpop.f32.mrb[0].mxu0
  %v954 = vadd.f32 %v809, %v953
  %v955 = vpop.f32.mrb[0].mxu0
  %956 = vmatprep.mubr.f32.mxu0 0.0
  %957 = vmatmul.mubr.f32.gmra.mrb[0].mxu0 %v870
  %v958 = vpop.f32.mrb[0].mxu0
  %v959 = vadd.f32 %v809, %v958
  %v960 = vpop.f32.mrb[0].mxu0
  %961 = vmatprep.mubr.f32.mxu0 0.0
  %962 = vmatmul.mubr.f32.gmra.mrb[0].mxu0 %v877
  %v963 = vpop.f32.mrb[0].mxu0
  %v964 = vadd.f32 %v809, %v963
  %v965 = vpop.f32.mrb[0].mxu0
  %966 = vdwg.mxu0
  %967 = vst [vmem:[%s3] sm:$0xff] %v949
  %968 = vst [vmem:[%s3 + $0x8] sm:$0xff] %v954
  %969 = vst [vmem:[%s3 + $0x10] sm:$0xff] %v959
  %970 = vst [vmem:[%s3 + $0x18] sm:$0xff] %v964
  // Predicated region
  $region14: #{fasttext_forward.1} parent=0 // pred_check
    _
  $region15: #{fasttext_forward.1} parent=0 // pred_check_branch
    %972 = sbr.rel (0) target = $region17
  $region16: #{fasttext_forward.1} parent=0 // pred_region
    _
  $region17: #{fasttext_forward.1} parent=0 // pred_fallthru
    _
  // Predicated region
  $region18: #{fasttext_forward.1} parent=0 // pred_check
    _
  $region19: #{fasttext_forward.1} parent=0 // pred_check_branch
    %974 = sbr.rel (0) target = $region21
  $region20: #{fasttext_forward.1} parent=0 // pred_region
    _
  $region21: #{fasttext_forward.1} parent=0 // pred_fallthru
    _

</llo_original>
